<compile_context>
chip_gen: v7x
topology: tpu7x:2x2x1
jax: 0.10.0
libtpu: 0.0.40
codegen_flags: <defaults>
</compile_context>

<pallas_src>
import math
from functools import partial

import jax
import jax.numpy as jnp
from jax.experimental import pallas as pl
from jax.experimental.pallas import tpu as pltpu

_LANE = 128
_SUBLANE = 8
# Raised above the 16/32 MiB scoped defaults; actual per-step usage with the
# tile sizes chosen below stays far under this on v5e/v6e/v7x.
_VMEM_LIMIT_BYTES = 64 * 1024 * 1024


def _round_up(x, m):
    return ((x + m - 1) // m) * m


def _pick_tile(dim_p, preferred=(512, 256, 128)):
    """Largest preferred tile that divides dim_p (dim_p is a multiple of 128)."""
    for t in preferred:
        if dim_p % t == 0:
            return t
    return dim_p


def _new_gelu(x):
    # 0.5 * x * (1 + tanh(sqrt(2/pi) * (x + 0.044715 * x^3)))  -- f32, EUP tanh.
    c = math.sqrt(2.0 / math.pi)
    return 0.5 * x * (1.0 + jnp.tanh(c * (x + 0.044715 * x * x * x)))


# ----------------------------------------------------------------------------
# Kernel 1: fused dual GEMM + gated GELU, full-K blocks, interleaved weights.
#   w01 block j holds [w0_tile_j | w1_tile_j]  (width 2*tn)
#   out_j = gelu_new(x @ w0_j) * (x @ w1_j)
# ----------------------------------------------------------------------------
def _dual_gemm_gelu_kernel(x_ref, w01_ref, o_ref, *, tn):
    acc = jnp.dot(x_ref[...], w01_ref[...], preferred_element_type=jnp.float32)
    gate = _new_gelu(acc[:, :tn])      # f32 epilogue (VPU/EUP), once per tile
    lin = acc[:, tn:]
    o_ref[...] = (gate * lin).astype(o_ref.dtype)


def dual_gemm_gelu(x, w01, *, tm, tn, out_dtype):
    M, K = x.shape
    N2 = w01.shape[1]          # 2 * d_ff_p (interleaved per tile)
    N = N2 // 2
    in_bytes = jnp.dtype(x.dtype).itemsize
    cost = pl.CostEstimate(
        flops=2 * M * K * N2,
        transcendentals=M * N,
        bytes_accessed=(M * K + K * N2) * in_bytes
        + M * N * jnp.dtype(out_dtype).itemsize,
    )
    return pl.pallas_call(
        partial(_dual_gemm_gelu_kernel, tn=tn),
        out_shape=jax.ShapeDtypeStruct((M, N), out_dtype),
        grid_spec=pltpu.PrefetchScalarGridSpec(
            num_scalar_prefetch=0,
            grid=(M // tm, N // tn),
            in_specs=[
                pl.BlockSpec((tm, K), lambda i, j: (i, 0)),
                pl.BlockSpec((K, 2 * tn), lambda i, j: (0, j)),
            ],
            out_specs=pl.BlockSpec((tm, tn), lambda i, j: (i, j)),
        ),
        compiler_params=pltpu.CompilerParams(
            dimension_semantics=("parallel", "parallel"),
            vmem_limit_bytes=_VMEM_LIMIT_BYTES,
        ),
        cost_estimate=cost,
    )(x, w01)


# ----------------------------------------------------------------------------
# Kernel 2: plain GEMM  y = h @ wo, full-K blocks, f32 accumulation.
# ----------------------------------------------------------------------------
def _matmul_kernel(a_ref, b_ref, o_ref):
    o_ref[...] = jnp.dot(
        a_ref[...], b_ref[...], preferred_element_type=jnp.float32
    ).astype(o_ref.dtype)


def matmul(a, b, *, tm, tn, out_dtype):
    M, K = a.shape
    _, N = b.shape
    cost = pl.CostEstimate(
        flops=2 * M * K * N,
        transcendentals=0,
        bytes_accessed=(M * K + K * N) * jnp.dtype(a.dtype).itemsize
        + M * N * jnp.dtype(out_dtype).itemsize,
    )
    return pl.pallas_call(
        _matmul_kernel,
        out_shape=jax.ShapeDtypeStruct((M, N), out_dtype),
        grid_spec=pltpu.PrefetchScalarGridSpec(
            num_scalar_prefetch=0,
            grid=(M // tm, N // tn),
            in_specs=[
                pl.BlockSpec((tm, K), lambda i, j: (i, 0)),
                pl.BlockSpec((K, tn), lambda i, j: (0, j)),
            ],
            out_specs=pl.BlockSpec((tm, tn), lambda i, j: (i, j)),
        ),
        compiler_params=pltpu.CompilerParams(
            dimension_semantics=("parallel", "parallel"),
            vmem_limit_bytes=_VMEM_LIMIT_BYTES,
        ),
        cost_estimate=cost,
    )(a, b)


# ----------------------------------------------------------------------------
# Module wrapper
# ----------------------------------------------------------------------------
@partial(jax.jit, static_argnames=("compute_dtype",))
def t5_dense_gated_gelu_dense(hidden_states, wi_0, wi_1, wo,
                              compute_dtype=jnp.bfloat16):
    """hidden_states: [B, S, d_model]
       wi_0, wi_1   : [d_ff, d_model]   (PyTorch nn.Linear weight layout)
       wo           : [d_model, d_ff]
    """
    B, S, d_model = hidden_states.shape
    d_ff = wi_0.shape[0]
    out_dtype = hidden_states.dtype
    M = B * S

    # ---- padded / tiled geometry ----------------------------------------
    d_model_p = _round_up(d_model, _LANE)
    d_ff_p = _round_up(d_ff, _LANE)
    tm = min(256, _round_up(M, _SUBLANE))   # bounded row tile (not tm = M)
    M_p = _round_up(M, tm)
    tn1 = _pick_tile(d_ff_p)                # per-half N tile of the dual GEMM
    tn2 = _pick_tile(d_model_p)             # N tile of the output GEMM

    # ---- operand prep: cast to compute dtype, transpose, zero-pad --------
    x2d = hidden_states.reshape(M, d_model).astype(compute_dtype)
    x2d = jnp.pad(x2d, ((0, M_p - M), (0, d_model_p - d_model)))

    w0_t = jnp.pad(wi_0.astype(compute_dtype).T,
                   ((0, d_model_p - d_model), (0, d_ff_p - d_ff)))
    w1_t = jnp.pad(wi_1.astype(compute_dtype).T,
                   ((0, d_model_p - d_model), (0, d_ff_p - d_ff)))
    # Interleave per N-tile so one (K, 2*tn1) block = [w0_tile_j | w1_tile_j].
    nb = d_ff_p // tn1
    w01 = jnp.concatenate(
        [w0_t.reshape(d_model_p, nb, tn1), w1_t.reshape(d_model_p, nb, tn1)],
        axis=2,
    ).reshape(d_model_p, nb * 2 * tn1)

    wo_t = jnp.pad(wo.astype(compute_dtype).T,
                   ((0, d_ff_p - d_ff), (0, d_model_p - d_model)))

    # ---- fused dual GEMM + gated GELU (h kept in compute dtype) ----------
    h = dual_gemm_gelu(x2d, w01, tm=tm, tn=tn1, out_dtype=compute_dtype)
    # ---- output projection -----------------------------------------------
    y = matmul(h, wo_t, tm=tm, tn=tn2, out_dtype=out_dtype)

    return y[:M, :d_model].reshape(B, S, d_model)


# ----------------------------------------------------------------------------
# Pure-JAX reference (mirrors the kernel's dtype handling)
# ----------------------------------------------------------------------------
def reference(hidden_states, wi_0, wi_1, wo, compute_dtype=jnp.float32):
    x = hidden_states.astype(compute_dtype)
    w0 = wi_0.astype(compute_dtype)
    w1 = wi_1.astype(compute_dtype)
    wo_ = wo.astype(compute_dtype)
    hg = _new_gelu(jnp.einsum("bsd,fd->bsf", x, w0,
                              preferred_element_type=jnp.float32))
    hl = jnp.einsum("bsd,fd->bsf", x, w1,
                    preferred_element_type=jnp.float32)
    h = (hg * hl).astype(compute_dtype)
    y = jnp.einsum("bsf,df->bsd", h, wo_, preferred_element_type=jnp.float32)
    return y.astype(hidden_states.dtype)


if __name__ == "__main__":
    # Small shapes consistent with the module (TPU-friendly multiples).
    batch, seq, d_model, d_ff = 2, 8, 128, 256

    key = jax.random.PRNGKey(0)
    k_x, k_w0, k_w1, k_wo = jax.random.split(key, 4)

    x = jax.random.normal(k_x, (batch, seq, d_model), dtype=jnp.float32)
    wi_0 = jax.random.uniform(k_w0, (d_ff, d_model), jnp.float32,
                              -1.0, 1.0) / math.sqrt(d_model)
    wi_1 = jax.random.uniform(k_w1, (d_ff, d_model), jnp.float32,
                              -1.0, 1.0) / math.sqrt(d_model)
    wo = jax.random.uniform(k_wo, (d_model, d_ff), jnp.float32,
                            -1.0, 1.0) / math.sqrt(d_ff)

    # 1) f32 compute path (tight correctness check).
    out_f32 = jax.block_until_ready(
        t5_dense_gated_gelu_dense(x, wi_0, wi_1, wo,
                                  compute_dtype=jnp.float32))
    ref_f32 = reference(x, wi_0, wi_1, wo, compute_dtype=jnp.float32)
    assert out_f32.shape == (batch, seq, d_model)
    assert jnp.allclose(out_f32, ref_f32, atol=1e-3, rtol=1e-3), "f32 mismatch"

    # 2) Default bf16-matmul / f32-accumulate performance path.
    out_bf16 = jax.block_until_ready(
        t5_dense_gated_gelu_dense(x, wi_0, wi_1, wo))
    ref_bf16 = reference(x, wi_0, wi_1, wo, compute_dtype=jnp.bfloat16)
    assert jnp.allclose(out_bf16, ref_bf16, atol=2e-2, rtol=2e-2), "bf16 mismatch"

    # 3) Non-tile-multiple shapes exercise the zero-padding path.
    b2, s2, dm2, df2 = 2, 7, 96, 200
    kx2, kw02, kw12, kwo2 = jax.random.split(jax.random.PRNGKey(1), 4)
    x2 = jax.random.normal(kx2, (b2, s2, dm2), dtype=jnp.float32)
    w02 = jax.random.uniform(kw02, (df2, dm2), jnp.float32,
                             -1.0, 1.0) / math.sqrt(dm2)
    w12 = jax.random.uniform(kw12, (df2, dm2), jnp.float32,
                             -1.0, 1.0) / math.sqrt(dm2)
    wo2 = jax.random.uniform(kwo2, (dm2, df2), jnp.float32,
                             -1.0, 1.0) / math.sqrt(df2)
    out2 = jax.block_until_ready(
        t5_dense_gated_gelu_dense(x2, w02, w12, wo2,
                                  compute_dtype=jnp.float32))
    ref2 = reference(x2, w02, w12, wo2, compute_dtype=jnp.float32)
    assert out2.shape == (b2, s2, dm2)
    assert jnp.allclose(out2, ref2, atol=1e-3, rtol=1e-3), "padded-shape mismatch"

    print("KERNEL_OK")
</pallas_src>

<mosaic_0001>
module attributes {stable_mosaic.version = 11 : i64} {
  func.func @_dual_gemm_gelu_kernel(%arg0: i32, %arg1: i32, %arg2: memref<16x128xf32, #tpu.memory_space<vmem>>, %arg3: memref<128x512xf32, #tpu.memory_space<vmem>>, %arg4: memref<16x256xf32, #tpu.memory_space<vmem>>) attributes {dimension_semantics = [#tpu.dimension_semantics<parallel>, #tpu.dimension_semantics<parallel>], iteration_bounds = array<i64: 1, 1>, scalar_prefetch = 0 : i64, scratch_operands = 0 : i64, tpu.core_type = #tpu.core_type<tc>, window_params = [{transform_indices = @transform_0, window_bounds = array<i64: 16, 128>}, {transform_indices = @transform_1, window_bounds = array<i64: 128, 512>}, {transform_indices = @transform_2, window_bounds = array<i64: 16, 256>}]} {
    %c0 = arith.constant 0 : index
    %c0_0 = arith.constant 0 : index
    %0 = vector.load %arg2[%c0, %c0_0] : memref<16x128xf32, #tpu.memory_space<vmem>>, vector<16x128xf32>
    %c0_1 = arith.constant 0 : index
    %c0_2 = arith.constant 0 : index
    %1 = vector.load %arg3[%c0_1, %c0_2] : memref<128x512xf32, #tpu.memory_space<vmem>>, vector<128x512xf32>
    %cst = arith.constant dense<0.000000e+00> : vector<16x512xf32>
    %2 = tpu.matmul %0, %1, %cst {dimension_numbers = #tpu.dot_dimension_numbers<[1], [0], [0], [1], [0, 0, 1, 1], [], []>} : vector<16x128xf32>, vector<128x512xf32>, vector<16x512xf32> -> vector<16x512xf32>
    %3 = vector.extract_strided_slice %2 {offsets = [0, 0], sizes = [16, 256], strides = [1, 1]} : vector<16x512xf32> to vector<16x256xf32>
    %cst_3 = arith.constant 5.000000e-01 : f32
    %4 = vector.broadcast %cst_3 : f32 to vector<16x256xf32>
    %5 = arith.mulf %4, %3 : vector<16x256xf32>
    %cst_4 = arith.constant 4.471500e-02 : f32
    %6 = vector.broadcast %cst_4 : f32 to vector<16x256xf32>
    %7 = arith.mulf %6, %3 : vector<16x256xf32>
    %8 = arith.mulf %7, %3 : vector<16x256xf32>
    %9 = arith.mulf %8, %3 : vector<16x256xf32>
    %10 = arith.addf %3, %9 : vector<16x256xf32>
    %cst_5 = arith.constant 0.797884583 : f32
    %11 = vector.broadcast %cst_5 : f32 to vector<16x256xf32>
    %12 = arith.mulf %11, %10 : vector<16x256xf32>
    %13 = math.tanh %12 : vector<16x256xf32>
    %cst_6 = arith.constant 1.000000e+00 : f32
    %14 = vector.broadcast %cst_6 : f32 to vector<16x256xf32>
    %15 = arith.addf %14, %13 : vector<16x256xf32>
    %16 = arith.mulf %5, %15 : vector<16x256xf32>
    %17 = vector.extract_strided_slice %2 {offsets = [0, 256], sizes = [16, 256], strides = [1, 1]} : vector<16x512xf32> to vector<16x256xf32>
    %18 = arith.mulf %16, %17 : vector<16x256xf32>
    %c0_7 = arith.constant 0 : index
    %c0_8 = arith.constant 0 : index
    %19 = vector.load %arg4[%c0_7, %c0_8] : memref<16x256xf32, #tpu.memory_space<vmem>>, vector<16x256xf32>
    tpu.vector_store %arg4[%c0_7, %c0_8], %18 {strides = array<i32>} : memref<16x256xf32, #tpu.memory_space<vmem>>, vector<16x256xf32>,
    return
  }
  func.func @transform_0(%arg0: i32, %arg1: i32) -> (i32, i32) {
    %c0_i32 = arith.constant 0 : i32
    %c0_i32_0 = arith.constant 0 : i32
    return %arg0, %c0_i32 : i32, i32
  }
  func.func @transform_1(%arg0: i32, %arg1: i32) -> (i32, i32) {
    %c0_i32 = arith.constant 0 : i32
    %c0_i32_0 = arith.constant 0 : i32
    return %c0_i32, %arg1 : i32, i32
  }
  func.func @transform_2(%arg0: i32, %arg1: i32) -> (i32, i32) {
    %c0_i32 = arith.constant 0 : i32
    return %arg0, %arg1 : i32, i32
  }
}

module attributes {stable_mosaic.version = 11 : i64} {
  func.func @_matmul_kernel(%arg0: i32, %arg1: i32, %arg2: memref<16x256xf32, #tpu.memory_space<vmem>>, %arg3: memref<256x128xf32, #tpu.memory_space<vmem>>, %arg4: memref<16x128xf32, #tpu.memory_space<vmem>>) attributes {dimension_semantics = [#tpu.dimension_semantics<parallel>, #tpu.dimension_semantics<parallel>], iteration_bounds = array<i64: 1, 1>, scalar_prefetch = 0 : i64, scratch_operands = 0 : i64, tpu.core_type = #tpu.core_type<tc>, window_params = [{transform_indices = @transform_0, window_bounds = array<i64: 16, 256>}, {transform_indices = @transform_1, window_bounds = array<i64: 256, 128>}, {transform_indices = @transform_2, window_bounds = array<i64: 16, 128>}]} {
    %c0 = arith.constant 0 : index
    %c0_0 = arith.constant 0 : index
    %0 = vector.load %arg2[%c0, %c0_0] : memref<16x256xf32, #tpu.memory_space<vmem>>, vector<16x256xf32>
    %c0_1 = arith.constant 0 : index
    %c0_2 = arith.constant 0 : index
    %1 = vector.load %arg3[%c0_1, %c0_2] : memref<256x128xf32, #tpu.memory_space<vmem>>, vector<256x128xf32>
    %cst = arith.constant dense<0.000000e+00> : vector<16x128xf32>
    %2 = tpu.matmul %0, %1, %cst {dimension_numbers = #tpu.dot_dimension_numbers<[1], [0], [0], [1], [0, 0, 1, 1], [], []>} : vector<16x256xf32>, vector<256x128xf32>, vector<16x128xf32> -> vector<16x128xf32>
    %c0_3 = arith.constant 0 : index
    %c0_4 = arith.constant 0 : index
    %3 = vector.load %arg4[%c0_3, %c0_4] : memref<16x128xf32, #tpu.memory_space<vmem>>, vector<16x128xf32>
    tpu.vector_store %arg4[%c0_3, %c0_4], %2 {strides = array<i32>} : memref<16x128xf32, #tpu.memory_space<vmem>>, vector<16x128xf32>,
    return
  }
  func.func @transform_0(%arg0: i32, %arg1: i32) -> (i32, i32) {
    %c0_i32 = arith.constant 0 : i32
    %c0_i32_0 = arith.constant 0 : i32
    return %arg0, %c0_i32 : i32, i32
  }
  func.func @transform_1(%arg0: i32, %arg1: i32) -> (i32, i32) {
    %c0_i32 = arith.constant 0 : i32
    %c0_i32_0 = arith.constant 0 : i32
    return %c0_i32, %arg1 : i32, i32
  }
  func.func @transform_2(%arg0: i32, %arg1: i32) -> (i32, i32) {
    %c0_i32 = arith.constant 0 : i32
    return %arg0, %arg1 : i32, i32
  }
}

</mosaic_0001>

<llo_original>
// kernel: t5_dense_gated_gelu_dense.2
$region0: #{t5_dense_gated_gelu_dense.2}
  #allocation0 [shape = 'u32[]', space=smem, size = 0x4, offset = 0x4, fixed_abs, tag = 'smem constant byte address 0x4 - core index']
  #allocation1 [shape = 'u32[144,128]{1,0:T(1,128)}', space=vmem, size = 0x12000, scoped, tag = 'internal scratch']
  %s0 = inlined_call_operand.hbm [shape: f32[16,128], index: 0, kind: input, shape index: {}]
  %s1 = inlined_call_operand.hbm [shape: f32[128,512], index: 1, kind: input, shape index: {}]
  %s2 = inlined_call_operand.hbm [shape: f32[16,256], index: 2, kind: output, shape index: {}]
  %s3 = sld [smem:[#allocation0]]
  $region26: #{t5_dense_gated_gelu_dense.2} parent=0
    _
  %s5 = ssub.s32 1, %s3
  %s6 = scalar_select 0, %s5, %s3
  $region1: #{t5_dense_gated_gelu_dense.2} parent=0
    #allocation2 [shape = 'u8[8192]{0}', space=vmem, size = 0x2000, scoped, tag = 'input window, operand 0, single buffered']
    #allocation3 [shape = 's32[1]{0}', space=sflag, size = 0x4, scoped, tag = 'scoped memory for t5_dense_gated_gelu_dense.2']
    #allocation4 [shape = 's32[1]{0}', space=sflag, size = 0x4, scoped, tag = 'scoped memory for t5_dense_gated_gelu_dense.2']
    #allocation5 [shape = 'u8[262144]{0}', space=vmem, size = 0x40000, scoped, tag = 'input window, operand 1, single buffered']
    #allocation6 [shape = 's32[1]{0}', space=sflag, size = 0x4, scoped, tag = 'scoped memory for t5_dense_gated_gelu_dense.2']
    #allocation7 [shape = 'u8[16384]{0}', space=vmem, size = 0x4000, scoped, tag = 'output window, operand 0, single buffered']
    %7 = vsyncpa [#allocation3], 0
    %8 = vsyncpa [#allocation6], 0
    %9 = vsyncpa [#allocation4], 0
    // Predicated region
    $region2: #{t5_dense_gated_gelu_dense.2} parent=1 // pred_check
      _
    $region3: #{t5_dense_gated_gelu_dense.2} parent=1 // pred_check_branch
      %11 = sbr.rel (0) target = $region5
    $region4: #{t5_dense_gated_gelu_dense.2} parent=1 // pred_region
      %s13 = ssub.s32 256, 256
      %14 = vsyncadd [#allocation3], %s13
      %s15 = sshll.u32 [#allocation2], 4
      %s16 = int_to_ptr.vmem [resolvable:$true] %s15
      %21 = dma.hbm_to_vmem [thread:$0]  %s0, 256, %s16, [#allocation3], 128, 128, 8
    $region5: #{t5_dense_gated_gelu_dense.2} parent=1 // pred_fallthru
      _
    // Predicated region
    $region6: #{t5_dense_gated_gelu_dense.2} parent=1 // pred_check
      _
    $region7: #{t5_dense_gated_gelu_dense.2} parent=1 // pred_check_branch
      %23 = sbr.rel (0) target = $region9
    $region8: #{t5_dense_gated_gelu_dense.2} parent=1 // pred_region
      %s25 = ssub.s32 8192, 8192
      %26 = vsyncadd [#allocation6], %s25
      %s27 = sshll.u32 [#allocation5], 4
      %s28 = int_to_ptr.vmem [resolvable:$true] %s27
      %33 = dma.hbm_to_vmem [thread:$0]  %s1, 8192, %s28, [#allocation6], 512, 512, 32
    $region9: #{t5_dense_gated_gelu_dense.2} parent=1 // pred_fallthru
      _
    // Predicated region
    $region10: #{t5_dense_gated_gelu_dense.2} parent=1 // pred_check
      _
    $region11: #{t5_dense_gated_gelu_dense.2} parent=1 // pred_check_branch
      %35 = sbr.rel (0) target = $region13
    $region12: #{t5_dense_gated_gelu_dense.2} parent=1 // pred_region
      %36 = dma.done [#allocation3], 256
    $region13: #{t5_dense_gated_gelu_dense.2} parent=1 // pred_fallthru
      _
    // Predicated region
    $region14: #{t5_dense_gated_gelu_dense.2} parent=1 // pred_check
      _
    $region15: #{t5_dense_gated_gelu_dense.2} parent=1 // pred_check_branch
      %38 = sbr.rel (0) target = $region17
    $region16: #{t5_dense_gated_gelu_dense.2} parent=1 // pred_region
      %39 = dma.done [#allocation6], 8192
    $region17: #{t5_dense_gated_gelu_dense.2} parent=1 // pred_fallthru
      _
    %v40 = vld [vmem:[#allocation2] sm:$0xff]
    %v41 = vld [vmem:[#allocation2 + $0x8] sm:$0xff]
    %v42 = vld [vmem:[#allocation5] sm:$0xff]
    %v43 = vld [vmem:[#allocation5 + $0x8] sm:$0xff]
    %v44 = vld [vmem:[#allocation5 + $0x10] sm:$0xff]
    %v45 = vld [vmem:[#allocation5 + $0x18] sm:$0xff]
    %v46 = vld [vmem:[#allocation5 + $0x20] sm:$0xff]
    %v47 = vld [vmem:[#allocation5 + $0x28] sm:$0xff]
    %v48 = vld [vmem:[#allocation5 + $0x30] sm:$0xff]
    %v49 = vld [vmem:[#allocation5 + $0x38] sm:$0xff]
    %v50 = vld [vmem:[#allocation5 + $0x40] sm:$0xff]
    %v51 = vld [vmem:[#allocation5 + $0x48] sm:$0xff]
    %v52 = vld [vmem:[#allocation5 + $0x50] sm:$0xff]
    %v53 = vld [vmem:[#allocation5 + $0x58] sm:$0xff]
    %v54 = vld [vmem:[#allocation5 + $0x60] sm:$0xff]
    %v55 = vld [vmem:[#allocation5 + $0x68] sm:$0xff]
    %v56 = vld [vmem:[#allocation5 + $0x70] sm:$0xff]
    %v57 = vld [vmem:[#allocation5 + $0x78] sm:$0xff]
    %v58 = vld [vmem:[#allocation5 + $0x80] sm:$0xff]
    %v59 = vld [vmem:[#allocation5 + $0x88] sm:$0xff]
    %v60 = vld [vmem:[#allocation5 + $0x90] sm:$0xff]
    %v61 = vld [vmem:[#allocation5 + $0x98] sm:$0xff]
    %v62 = vld [vmem:[#allocation5 + $0xa0] sm:$0xff]
    %v63 = vld [vmem:[#allocation5 + $0xa8] sm:$0xff]
    %v64 = vld [vmem:[#allocation5 + $0xb0] sm:$0xff]
    %v65 = vld [vmem:[#allocation5 + $0xb8] sm:$0xff]
    %v66 = vld [vmem:[#allocation5 + $0xc0] sm:$0xff]
    %v67 = vld [vmem:[#allocation5 + $0xc8] sm:$0xff]
    %v68 = vld [vmem:[#allocation5 + $0xd0] sm:$0xff]
    %v69 = vld [vmem:[#allocation5 + $0xd8] sm:$0xff]
    %v70 = vld [vmem:[#allocation5 + $0xe0] sm:$0xff]
    %v71 = vld [vmem:[#allocation5 + $0xe8] sm:$0xff]
    %v72 = vld [vmem:[#allocation5 + $0xf0] sm:$0xff]
    %v73 = vld [vmem:[#allocation5 + $0xf8] sm:$0xff]
    %v74 = vld [vmem:[#allocation5 + $0x100] sm:$0xff]
    %v75 = vld [vmem:[#allocation5 + $0x108] sm:$0xff]
    %v76 = vld [vmem:[#allocation5 + $0x110] sm:$0xff]
    %v77 = vld [vmem:[#allocation5 + $0x118] sm:$0xff]
    %v78 = vld [vmem:[#allocation5 + $0x120] sm:$0xff]
    %v79 = vld [vmem:[#allocation5 + $0x128] sm:$0xff]
    %v80 = vld [vmem:[#allocation5 + $0x130] sm:$0xff]
    %v81 = vld [vmem:[#allocation5 + $0x138] sm:$0xff]
    %v82 = vld [vmem:[#allocation5 + $0x140] sm:$0xff]
    %v83 = vld [vmem:[#allocation5 + $0x148] sm:$0xff]
    %v84 = vld [vmem:[#allocation5 + $0x150] sm:$0xff]
    %v85 = vld [vmem:[#allocation5 + $0x158] sm:$0xff]
    %v86 = vld [vmem:[#allocation5 + $0x160] sm:$0xff]
    %v87 = vld [vmem:[#allocation5 + $0x168] sm:$0xff]
    %v88 = vld [vmem:[#allocation5 + $0x170] sm:$0xff]
    %v89 = vld [vmem:[#allocation5 + $0x178] sm:$0xff]
    %v90 = vld [vmem:[#allocation5 + $0x180] sm:$0xff]
    %v91 = vld [vmem:[#allocation5 + $0x188] sm:$0xff]
    %v92 = vld [vmem:[#allocation5 + $0x190] sm:$0xff]
    %v93 = vld [vmem:[#allocation5 + $0x198] sm:$0xff]
    %v94 = vld [vmem:[#allocation5 + $0x1a0] sm:$0xff]
    %v95 = vld [vmem:[#allocation5 + $0x1a8] sm:$0xff]
    %v96 = vld [vmem:[#allocation5 + $0x1b0] sm:$0xff]
    %v97 = vld [vmem:[#allocation5 + $0x1b8] sm:$0xff]
    %v98 = vld [vmem:[#allocation5 + $0x1c0] sm:$0xff]
    %v99 = vld [vmem:[#allocation5 + $0x1c8] sm:$0xff]
    %v100 = vld [vmem:[#allocation5 + $0x1d0] sm:$0xff]
    %v101 = vld [vmem:[#allocation5 + $0x1d8] sm:$0xff]
    %v102 = vld [vmem:[#allocation5 + $0x1e0] sm:$0xff]
    %v103 = vld [vmem:[#allocation5 + $0x1e8] sm:$0xff]
    %v104 = vld [vmem:[#allocation5 + $0x1f0] sm:$0xff]
    %v105 = vld [vmem:[#allocation5 + $0x1f8] sm:$0xff]
    %106 = vmatprep.subr.mxu0 %v43
    %107 = vmatpush1.msra.mxu0 %v42
    %108 = vmatprep.subr.mxu0 %v47
    %109 = vmatpush1.msra.mxu0 %v46
    %110 = vmatprep.subr.mxu0 %v51
    %111 = vmatpush1.msra.mxu0 %v50
    %112 = vmatprep.subr.mxu0 %v55
    %113 = vmatpush1.msra.mxu0 %v54
    %114 = vmatprep.subr.mxu0 %v59
    %115 = vmatpush1.msra.mxu0 %v58
    %116 = vmatprep.subr.mxu0 %v63
    %117 = vmatpush1.msra.mxu0 %v62
    %118 = vmatprep.subr.mxu0 %v67
    %119 = vmatpush1.msra.mxu0 %v66
    %120 = vmatprep.subr.mxu0 %v71
    %121 = vmatpush1.msra.mxu0 %v70
    %122 = vmatprep.subr.mxu0 %v75
    %123 = vmatpush1.msra.mxu0 %v74
    %124 = vmatprep.subr.mxu0 %v79
    %125 = vmatpush1.msra.mxu0 %v78
    %126 = vmatprep.subr.mxu0 %v83
    %127 = vmatpush1.msra.mxu0 %v82
    %128 = vmatprep.subr.mxu0 %v87
    %129 = vmatpush1.msra.mxu0 %v86
    %130 = vmatprep.subr.mxu0 %v91
    %131 = vmatpush1.msra.mxu0 %v90
    %132 = vmatprep.subr.mxu0 %v95
    %133 = vmatpush1.msra.mxu0 %v94
    %134 = vmatprep.subr.mxu0 %v99
    %135 = vmatpush1.msra.mxu0 %v98
    %136 = vmatprep.subr.mxu0 %v103
    %137 = vmatpush1.msra.mxu0 %v102
    %138 = vmatprep.subr.mxu0 0.0
    %139 = vmatpush1.msra.mxu0 0.0
    %140 = vmatprep.subr.mxu0 0.0
    %141 = vmatpush1.msra.mxu0 0.0
    %142 = vmatprep.subr.mxu0 0.0
    %143 = vmatpush1.msra.mxu0 0.0
    %144 = vmatprep.subr.mxu0 0.0
    %145 = vmatpush1.msra.mxu0 0.0
    %146 = vmatprep.subr.mxu0 0.0
    %147 = vmatpush1.msra.mxu0 0.0
    %148 = vmatprep.subr.mxu0 0.0
    %149 = vmatpush1.msra.mxu0 0.0
    %150 = vmatprep.subr.mxu0 0.0
    %151 = vmatpush1.msra.mxu0 0.0
    %152 = vmatprep.subr.mxu0 0.0
    %153 = vmatpush1.msra.mxu0 0.0
    %154 = vmatprep.subr.mxu0 0.0
    %155 = vmatpush1.msra.mxu0 0.0
    %156 = vmatprep.subr.mxu0 0.0
    %157 = vmatpush1.msra.mxu0 0.0
    %158 = vmatprep.subr.mxu0 0.0
    %159 = vmatpush1.msra.mxu0 0.0
    %160 = vmatprep.subr.mxu0 0.0
    %161 = vmatpush1.msra.mxu0 0.0
    %162 = vmatprep.subr.mxu0 0.0
    %163 = vmatpush1.msra.mxu0 0.0
    %164 = vmatprep.subr.mxu0 0.0
    %165 = vmatpush1.msra.mxu0 0.0
    %166 = vmatprep.subr.mxu0 0.0
    %167 = vmatpush1.msra.mxu0 0.0
    %168 = vmatprep.subr.mxu0 0.0
    %169 = vmatpush1.msra.mxu0 0.0
    %170 = vmatprep.mubr.f32.mxu0 0.0
    %171 = vmatmul.mubr.f32.gmra.mrb[0].mxu0 %v40
    %v172 = vpop.f32.mrb[0].mxu0
    %v173 = vadd.f32 0.0, %v172
    %v174 = vpop.f32.mrb[0].mxu0
    %v175 = vadd.f32 0.0, %v174
    %176 = vmatprep.mubr.f32.mxu0 0.0
    %177 = vmatmul.mubr.f32.gmra.mrb[0].mxu0 %v41
    %v178 = vpop.f32.mrb[0].mxu0
    %v179 = vadd.f32 0.0, %v178
    %v180 = vpop.f32.mrb[0].mxu0
    %v181 = vadd.f32 0.0, %v180
    %182 = vdwg.mxu0
    %183 = vmatprep.subr.mxu0 %v45
    %184 = vmatpush1.msra.mxu0 %v44
    %185 = vmatprep.subr.mxu0 %v49
    %186 = vmatpush1.msra.mxu0 %v48
    %187 = vmatprep.subr.mxu0 %v53
    %188 = vmatpush1.msra.mxu0 %v52
    %189 = vmatprep.subr.mxu0 %v57
    %190 = vmatpush1.msra.mxu0 %v56
    %191 = vmatprep.subr.mxu0 %v61
    %192 = vmatpush1.msra.mxu0 %v60
    %193 = vmatprep.subr.mxu0 %v65
    %194 = vmatpush1.msra.mxu0 %v64
    %195 = vmatprep.subr.mxu0 %v69
    %196 = vmatpush1.msra.mxu0 %v68
    %197 = vmatprep.subr.mxu0 %v73
    %198 = vmatpush1.msra.mxu0 %v72
    %199 = vmatprep.subr.mxu0 %v77
    %200 = vmatpush1.msra.mxu0 %v76
    %201 = vmatprep.subr.mxu0 %v81
    %202 = vmatpush1.msra.mxu0 %v80
    %203 = vmatprep.subr.mxu0 %v85
    %204 = vmatpush1.msra.mxu0 %v84
    %205 = vmatprep.subr.mxu0 %v89
    %206 = vmatpush1.msra.mxu0 %v88
    %207 = vmatprep.subr.mxu0 %v93
    %208 = vmatpush1.msra.mxu0 %v92
    %209 = vmatprep.subr.mxu0 %v97
    %210 = vmatpush1.msra.mxu0 %v96
    %211 = vmatprep.subr.mxu0 %v101
    %212 = vmatpush1.msra.mxu0 %v100
    %213 = vmatprep.subr.mxu0 %v105
    %214 = vmatpush1.msra.mxu0 %v104
    %215 = vmatprep.subr.mxu0 0.0
    %216 = vmatpush1.msra.mxu0 0.0
    %217 = vmatprep.subr.mxu0 0.0
    %218 = vmatpush1.msra.mxu0 0.0
    %219 = vmatprep.subr.mxu0 0.0
    %220 = vmatpush1.msra.mxu0 0.0
    %221 = vmatprep.subr.mxu0 0.0
    %222 = vmatpush1.msra.mxu0 0.0
    %223 = vmatprep.subr.mxu0 0.0
    %224 = vmatpush1.msra.mxu0 0.0
    %225 = vmatprep.subr.mxu0 0.0
    %226 = vmatpush1.msra.mxu0 0.0
    %227 = vmatprep.subr.mxu0 0.0
    %228 = vmatpush1.msra.mxu0 0.0
    %229 = vmatprep.subr.mxu0 0.0
    %230 = vmatpush1.msra.mxu0 0.0
    %231 = vmatprep.subr.mxu0 0.0
    %232 = vmatpush1.msra.mxu0 0.0
    %233 = vmatprep.subr.mxu0 0.0
    %234 = vmatpush1.msra.mxu0 0.0
    %235 = vmatprep.subr.mxu0 0.0
    %236 = vmatpush1.msra.mxu0 0.0
    %237 = vmatprep.subr.mxu0 0.0
    %238 = vmatpush1.msra.mxu0 0.0
    %239 = vmatprep.subr.mxu0 0.0
    %240 = vmatpush1.msra.mxu0 0.0
    %241 = vmatprep.subr.mxu0 0.0
    %242 = vmatpush1.msra.mxu0 0.0
    %243 = vmatprep.subr.mxu0 0.0
    %244 = vmatpush1.msra.mxu0 0.0
    %245 = vmatprep.subr.mxu0 0.0
    %246 = vmatpush1.msra.mxu0 0.0
    %247 = vmatprep.mubr.f32.mxu0 0.0
    %248 = vmatmul.mubr.f32.gmra.mrb[0].mxu0 %v40
    %v249 = vpop.f32.mrb[0].mxu0
    %v250 = vadd.f32 0.0, %v249
    %v251 = vpop.f32.mrb[0].mxu0
    %v252 = vadd.f32 0.0, %v251
    %253 = vmatprep.mubr.f32.mxu0 0.0
    %254 = vmatmul.mubr.f32.gmra.mrb[0].mxu0 %v41
    %v255 = vpop.f32.mrb[0].mxu0
    %v256 = vadd.f32 0.0, %v255
    %v257 = vpop.f32.mrb[0].mxu0
    %v258 = vadd.f32 0.0, %v257
    %259 = vdwg.mxu0
    %v260 = vmul.f32 %v173, 0.5
    %v261 = vmul.f32 %v175, 0.5
    %v262 = vmul.f32 %v179, 0.5
    %v263 = vmul.f32 %v181, 0.5
    %v264 = vmul.f32 %v173, 0.044715
    %v265 = vmul.f32 %v175, 0.044715
    %v266 = vmul.f32 %v179, 0.044715
    %v267 = vmul.f32 %v181, 0.044715
    %v268 = vmul.f32 %v264, %v173
    %v269 = vmul.f32 %v265, %v175
    %v270 = vmul.f32 %v266, %v179
    %v271 = vmul.f32 %v267, %v181
    %v272 = vmul.f32 %v268, %v173
    %v273 = vmul.f32 %v269, %v175
    %v274 = vmul.f32 %v270, %v179
    %v275 = vmul.f32 %v271, %v181
    %v276 = vadd.f32 %v173, %v272
    %v277 = vadd.f32 %v175, %v273
    %v278 = vadd.f32 %v179, %v274
    %v279 = vadd.f32 %v181, %v275
    %v280 = vmul.f32 %v276, 0.7978846
    %v281 = vmul.f32 %v277, 0.7978846
    %v282 = vmul.f32 %v278, 0.7978846
    %v283 = vmul.f32 %v279, 0.7978846
    %v284 = vtanh.pop %v280
    %v285 = vtanh.pop %v281
    %v286 = vtanh.pop %v282
    %v287 = vtanh.pop %v283
    %v288 = vadd.f32 %v284, 1.0
    %v289 = vadd.f32 %v285, 1.0
    %v290 = vadd.f32 %v286, 1.0
    %v291 = vadd.f32 %v287, 1.0
    %v292 = vmul.f32 %v260, %v288
    %v293 = vmul.f32 %v261, %v289
    %v294 = vmul.f32 %v262, %v290
    %v295 = vmul.f32 %v263, %v291
    %v296 = vmul.f32 %v292, %v250
    %v297 = vmul.f32 %v293, %v252
    %v298 = vmul.f32 %v294, %v256
    %v299 = vmul.f32 %v295, %v258
    %300 = vst [vmem:[#allocation7] sm:$0xff] %v296
    %301 = vst [vmem:[#allocation7 + $0x8] sm:$0xff] %v297
    %302 = vst [vmem:[#allocation7 + $0x10] sm:$0xff] %v298
    %303 = vst [vmem:[#allocation7 + $0x18] sm:$0xff] %v299
    // Predicated region
    $region18: #{t5_dense_gated_gelu_dense.2} parent=1 // pred_check
      _
    $region19: #{t5_dense_gated_gelu_dense.2} parent=1 // pred_check_branch
      %305 = sbr.rel (0) target = $region21
    $region20: #{t5_dense_gated_gelu_dense.2} parent=1 // pred_region
      %s307 = ssub.s32 512, 512
      %308 = vsyncadd [#allocation4], %s307
      %s309 = sshll.u32 [#allocation7], 4
      %s310 = int_to_ptr.vmem [resolvable:$true] %s309
      %315 = dma.vmem_to_hbm [thread:$0]  %s310, 512, %s2, [#allocation4], 256, 256, 16
    $region21: #{t5_dense_gated_gelu_dense.2} parent=1 // pred_fallthru
      _
    // Predicated region
    $region22: #{t5_dense_gated_gelu_dense.2} parent=1 // pred_check
      _
    $region23: #{t5_dense_gated_gelu_dense.2} parent=1 // pred_check_branch
      %317 = sbr.rel (0) target = $region25
    $region24: #{t5_dense_gated_gelu_dense.2} parent=1 // pred_region
      %318 = dma.done [#allocation4], 512
    $region25: #{t5_dense_gated_gelu_dense.2} parent=1 // pred_fallthru
      _
    %319 = vsyncpa [#allocation3], 1
    %320 = vsyncpa [#allocation6], 1
    %321 = vsyncpa [#allocation4], 1

// kernel: t5_dense_gated_gelu_dense.3
$region0: #{t5_dense_gated_gelu_dense.3}
  #allocation0 [shape = 'u32[]', space=smem, size = 0x4, offset = 0x4, fixed_abs, tag = 'smem constant byte address 0x4 - core index']
  #allocation1 [shape = 'u32[144,128]{1,0:T(1,128)}', space=vmem, size = 0x12000, scoped, tag = 'internal scratch']
  %s0 = inlined_call_operand.hbm [shape: f32[16,256], index: 0, kind: input, shape index: {}]
  %s1 = inlined_call_operand.hbm [shape: f32[256,128], index: 1, kind: input, shape index: {}]
  %s2 = inlined_call_operand.hbm [shape: f32[16,128], index: 2, kind: output, shape index: {}]
  %s3 = sld [smem:[#allocation0]]
  $region26: #{t5_dense_gated_gelu_dense.3} parent=0
    _
  %s5 = ssub.s32 1, %s3
  %s6 = scalar_select 0, %s5, %s3
  $region1: #{t5_dense_gated_gelu_dense.3} parent=0
    #allocation2 [shape = 'u8[16384]{0}', space=vmem, size = 0x4000, scoped, tag = 'input window, operand 0, single buffered']
    #allocation3 [shape = 's32[1]{0}', space=sflag, size = 0x4, scoped, tag = 'scoped memory for t5_dense_gated_gelu_dense.3']
    #allocation4 [shape = 's32[1]{0}', space=sflag, size = 0x4, scoped, tag = 'scoped memory for t5_dense_gated_gelu_dense.3']
    #allocation5 [shape = 'u8[131072]{0}', space=vmem, size = 0x20000, scoped, tag = 'input window, operand 1, single buffered']
    #allocation6 [shape = 's32[1]{0}', space=sflag, size = 0x4, scoped, tag = 'scoped memory for t5_dense_gated_gelu_dense.3']
    #allocation7 [shape = 'u8[8192]{0}', space=vmem, size = 0x2000, scoped, tag = 'output window, operand 0, single buffered']
    %7 = vsyncpa [#allocation3], 0
    %8 = vsyncpa [#allocation6], 0
    %9 = vsyncpa [#allocation4], 0
    // Predicated region
    $region2: #{t5_dense_gated_gelu_dense.3} parent=1 // pred_check
      _
    $region3: #{t5_dense_gated_gelu_dense.3} parent=1 // pred_check_branch
      %11 = sbr.rel (0) target = $region5
    $region4: #{t5_dense_gated_gelu_dense.3} parent=1 // pred_region
      %s13 = ssub.s32 512, 512
      %14 = vsyncadd [#allocation3], %s13
      %s15 = sshll.u32 [#allocation2], 4
      %s16 = int_to_ptr.vmem [resolvable:$true] %s15
      %21 = dma.hbm_to_vmem [thread:$0]  %s0, 512, %s16, [#allocation3], 256, 256, 16
    $region5: #{t5_dense_gated_gelu_dense.3} parent=1 // pred_fallthru
      _
    // Predicated region
    $region6: #{t5_dense_gated_gelu_dense.3} parent=1 // pred_check
      _
    $region7: #{t5_dense_gated_gelu_dense.3} parent=1 // pred_check_branch
      %23 = sbr.rel (0) target = $region9
    $region8: #{t5_dense_gated_gelu_dense.3} parent=1 // pred_region
      %s25 = ssub.s32 4096, 4096
      %26 = vsyncadd [#allocation6], %s25
      %s27 = sshll.u32 [#allocation5], 4
      %s28 = int_to_ptr.vmem [resolvable:$true] %s27
      %33 = dma.hbm_to_vmem [thread:$0]  %s1, 4096, %s28, [#allocation6], 128, 128, 8
    $region9: #{t5_dense_gated_gelu_dense.3} parent=1 // pred_fallthru
      _
    // Predicated region
    $region10: #{t5_dense_gated_gelu_dense.3} parent=1 // pred_check
      _
    $region11: #{t5_dense_gated_gelu_dense.3} parent=1 // pred_check_branch
      %35 = sbr.rel (0) target = $region13
    $region12: #{t5_dense_gated_gelu_dense.3} parent=1 // pred_region
      %36 = dma.done [#allocation3], 512
    $region13: #{t5_dense_gated_gelu_dense.3} parent=1 // pred_fallthru
      _
    // Predicated region
    $region14: #{t5_dense_gated_gelu_dense.3} parent=1 // pred_check
      _
    $region15: #{t5_dense_gated_gelu_dense.3} parent=1 // pred_check_branch
      %38 = sbr.rel (0) target = $region17
    $region16: #{t5_dense_gated_gelu_dense.3} parent=1 // pred_region
      %39 = dma.done [#allocation6], 4096
    $region17: #{t5_dense_gated_gelu_dense.3} parent=1 // pred_fallthru
      _
    %v40 = vld [vmem:[#allocation2] sm:$0xff]
    %v41 = vld [vmem:[#allocation2 + $0x8] sm:$0xff]
    %v42 = vld [vmem:[#allocation2 + $0x10] sm:$0xff]
    %v43 = vld [vmem:[#allocation2 + $0x18] sm:$0xff]
    %v44 = vld [vmem:[#allocation5] sm:$0xff]
    %v45 = vld [vmem:[#allocation5 + $0x8] sm:$0xff]
    %v46 = vld [vmem:[#allocation5 + $0x10] sm:$0xff]
    %v47 = vld [vmem:[#allocation5 + $0x18] sm:$0xff]
    %v48 = vld [vmem:[#allocation5 + $0x20] sm:$0xff]
    %v49 = vld [vmem:[#allocation5 + $0x28] sm:$0xff]
    %v50 = vld [vmem:[#allocation5 + $0x30] sm:$0xff]
    %v51 = vld [vmem:[#allocation5 + $0x38] sm:$0xff]
    %v52 = vld [vmem:[#allocation5 + $0x40] sm:$0xff]
    %v53 = vld [vmem:[#allocation5 + $0x48] sm:$0xff]
    %v54 = vld [vmem:[#allocation5 + $0x50] sm:$0xff]
    %v55 = vld [vmem:[#allocation5 + $0x58] sm:$0xff]
    %v56 = vld [vmem:[#allocation5 + $0x60] sm:$0xff]
    %v57 = vld [vmem:[#allocation5 + $0x68] sm:$0xff]
    %v58 = vld [vmem:[#allocation5 + $0x70] sm:$0xff]
    %v59 = vld [vmem:[#allocation5 + $0x78] sm:$0xff]
    %v60 = vld [vmem:[#allocation5 + $0x80] sm:$0xff]
    %v61 = vld [vmem:[#allocation5 + $0x88] sm:$0xff]
    %v62 = vld [vmem:[#allocation5 + $0x90] sm:$0xff]
    %v63 = vld [vmem:[#allocation5 + $0x98] sm:$0xff]
    %v64 = vld [vmem:[#allocation5 + $0xa0] sm:$0xff]
    %v65 = vld [vmem:[#allocation5 + $0xa8] sm:$0xff]
    %v66 = vld [vmem:[#allocation5 + $0xb0] sm:$0xff]
    %v67 = vld [vmem:[#allocation5 + $0xb8] sm:$0xff]
    %v68 = vld [vmem:[#allocation5 + $0xc0] sm:$0xff]
    %v69 = vld [vmem:[#allocation5 + $0xc8] sm:$0xff]
    %v70 = vld [vmem:[#allocation5 + $0xd0] sm:$0xff]
    %v71 = vld [vmem:[#allocation5 + $0xd8] sm:$0xff]
    %v72 = vld [vmem:[#allocation5 + $0xe0] sm:$0xff]
    %v73 = vld [vmem:[#allocation5 + $0xe8] sm:$0xff]
    %v74 = vld [vmem:[#allocation5 + $0xf0] sm:$0xff]
    %v75 = vld [vmem:[#allocation5 + $0xf8] sm:$0xff]
    %76 = vmatprep.subr.mxu0 0.0
    %77 = vmatpush1.msra.mxu0 %v44
    %78 = vmatprep.subr.mxu0 0.0
    %79 = vmatpush1.msra.mxu0 %v45
    %80 = vmatprep.subr.mxu0 0.0
    %81 = vmatpush1.msra.mxu0 %v46
    %82 = vmatprep.subr.mxu0 0.0
    %83 = vmatpush1.msra.mxu0 %v47
    %84 = vmatprep.subr.mxu0 0.0
    %85 = vmatpush1.msra.mxu0 %v48
    %86 = vmatprep.subr.mxu0 0.0
    %87 = vmatpush1.msra.mxu0 %v49
    %88 = vmatprep.subr.mxu0 0.0
    %89 = vmatpush1.msra.mxu0 %v50
    %90 = vmatprep.subr.mxu0 0.0
    %91 = vmatpush1.msra.mxu0 %v51
    %92 = vmatprep.subr.mxu0 0.0
    %93 = vmatpush1.msra.mxu0 %v52
    %94 = vmatprep.subr.mxu0 0.0
    %95 = vmatpush1.msra.mxu0 %v53
    %96 = vmatprep.subr.mxu0 0.0
    %97 = vmatpush1.msra.mxu0 %v54
    %98 = vmatprep.subr.mxu0 0.0
    %99 = vmatpush1.msra.mxu0 %v55
    %100 = vmatprep.subr.mxu0 0.0
    %101 = vmatpush1.msra.mxu0 %v56
    %102 = vmatprep.subr.mxu0 0.0
    %103 = vmatpush1.msra.mxu0 %v57
    %104 = vmatprep.subr.mxu0 0.0
    %105 = vmatpush1.msra.mxu0 %v58
    %106 = vmatprep.subr.mxu0 0.0
    %107 = vmatpush1.msra.mxu0 %v59
    %108 = vmatprep.subr.mxu0 0.0
    %109 = vmatpush1.msra.mxu0 %v60
    %110 = vmatprep.subr.mxu0 0.0
    %111 = vmatpush1.msra.mxu0 %v61
    %112 = vmatprep.subr.mxu0 0.0
    %113 = vmatpush1.msra.mxu0 %v62
    %114 = vmatprep.subr.mxu0 0.0
    %115 = vmatpush1.msra.mxu0 %v63
    %116 = vmatprep.subr.mxu0 0.0
    %117 = vmatpush1.msra.mxu0 %v64
    %118 = vmatprep.subr.mxu0 0.0
    %119 = vmatpush1.msra.mxu0 %v65
    %120 = vmatprep.subr.mxu0 0.0
    %121 = vmatpush1.msra.mxu0 %v66
    %122 = vmatprep.subr.mxu0 0.0
    %123 = vmatpush1.msra.mxu0 %v67
    %124 = vmatprep.subr.mxu0 0.0
    %125 = vmatpush1.msra.mxu0 %v68
    %126 = vmatprep.subr.mxu0 0.0
    %127 = vmatpush1.msra.mxu0 %v69
    %128 = vmatprep.subr.mxu0 0.0
    %129 = vmatpush1.msra.mxu0 %v70
    %130 = vmatprep.subr.mxu0 0.0
    %131 = vmatpush1.msra.mxu0 %v71
    %132 = vmatprep.subr.mxu0 0.0
    %133 = vmatpush1.msra.mxu0 %v72
    %134 = vmatprep.subr.mxu0 0.0
    %135 = vmatpush1.msra.mxu0 %v73
    %136 = vmatprep.subr.mxu0 0.0
    %137 = vmatpush1.msra.mxu0 %v74
    %138 = vmatprep.subr.mxu0 0.0
    %139 = vmatpush1.msra.mxu0 %v75
    %140 = vmatprep.mubr.f32.mxu0 %v41
    %141 = vmatmul.mubr.f32.gmra.mrb[0].mxu0 %v40
    %v142 = vpop.f32.mrb[0].mxu0
    %v143 = vadd.f32 0.0, %v142
    %v144 = vpop.f32.mrb[0].mxu0
    %145 = vmatprep.mubr.f32.mxu0 %v43
    %146 = vmatmul.mubr.f32.gmra.mrb[0].mxu0 %v42
    %v147 = vpop.f32.mrb[0].mxu0
    %v148 = vadd.f32 0.0, %v147
    %v149 = vpop.f32.mrb[0].mxu0
    %150 = vdwg.mxu0
    %151 = vst [vmem:[#allocation7] sm:$0xff] %v143
    %152 = vst [vmem:[#allocation7 + $0x8] sm:$0xff] %v148
    // Predicated region
    $region18: #{t5_dense_gated_gelu_dense.3} parent=1 // pred_check
      _
    $region19: #{t5_dense_gated_gelu_dense.3} parent=1 // pred_check_branch
      %154 = sbr.rel (0) target = $region21
    $region20: #{t5_dense_gated_gelu_dense.3} parent=1 // pred_region
      %s156 = ssub.s32 256, 256
      %157 = vsyncadd [#allocation4], %s156
      %s158 = sshll.u32 [#allocation7], 4
      %s159 = int_to_ptr.vmem [resolvable:$true] %s158
      %164 = dma.vmem_to_hbm [thread:$0]  %s159, 256, %s2, [#allocation4], 128, 128, 8
    $region21: #{t5_dense_gated_gelu_dense.3} parent=1 // pred_fallthru
      _
    // Predicated region
    $region22: #{t5_dense_gated_gelu_dense.3} parent=1 // pred_check
      _
    $region23: #{t5_dense_gated_gelu_dense.3} parent=1 // pred_check_branch
      %166 = sbr.rel (0) target = $region25
    $region24: #{t5_dense_gated_gelu_dense.3} parent=1 // pred_region
      %167 = dma.done [#allocation4], 256
    $region25: #{t5_dense_gated_gelu_dense.3} parent=1 // pred_fallthru
      _
    %168 = vsyncpa [#allocation3], 1
    %169 = vsyncpa [#allocation6], 1
    %170 = vsyncpa [#allocation4], 1

</llo_original>
